<compile_context>
chip_gen: v5e
topology: v5e:2x2
jax: 0.10.0
libtpu: 0.0.40
codegen_flags: <defaults>
</compile_context>

<pallas_src>
import functools

import jax
import jax.numpy as jnp
from jax.experimental import pallas as pl
from jax.experimental.pallas import tpu as pltpu

_K1, _K2, _K3 = 0.63576, 1.8732, 1.48695
_PAD_VALUE = 1.0e4  # log_alpha -> +big  =>  kl_reg contribution is exactly 0


def _round_up(x, m):
    return ((x + m - 1) // m) * m


def _sgvlb_kernel(logits_ref, tgt_ref, la_ref, scalars_ref, out_ref, acc_ref,
                  *, n_rows, tile_rows, tiles_per_core):
    p = pl.program_id(0)          # "parallel" core-split axis
    i = pl.program_id(1)          # "arbitrary" row-tile axis (carries acc)

    @pl.when(i == 0)
    def _init():
        acc_ref[...] = jnp.zeros_like(acc_ref)

    # ---- cross-entropy partial sum for this row tile (ragged tail masked) ---
    tile_idx = p * tiles_per_core + i                      # may be a phantom tile
    rows = tile_idx * tile_rows + jax.lax.broadcasted_iota(
        jnp.int32, (tile_rows, 1), 0)
    valid = rows < n_rows                                  # (tn, 1) bool

    # Zero out garbage rows (partial / phantom blocks) BEFORE the exp so no
    # NaN/inf can leak through; select (not multiply) keeps NaNs out anyway.
    logits = jnp.where(valid, logits_ref[...].astype(jnp.float32), 0.0)
    tgt = tgt_ref[...]                                     # (tn, 1) int32

    m = jnp.max(logits, axis=-1, keepdims=True)            # stable logsumexp
    lse = m + jnp.log(jnp.sum(jnp.exp(logits - m), axis=-1, keepdims=True))
    col = jax.lax.broadcasted_iota(jnp.int32, (1, logits.shape[1]), 1)
    picked = jnp.sum(jnp.where(col == tgt, logits, 0.0), axis=-1, keepdims=True)
    nll = jnp.where(valid, lse - picked, 0.0)              # (tn, 1)
    ce_part = jnp.sum(nll, axis=0, keepdims=True)          # (1, 1)

    # ---- KL partial for this grid step's chunk of packed log_alpha ----------
    la = la_ref[...]                                       # (rk, 128) f32
    z = _K2 + _K3 * la
    sig = 1.0 / (1.0 + jnp.exp(-z))                        # exact sigmoid (stable)
    # numerically stable softplus(-la) = log(1 + exp(-la))
    sp = jnp.maximum(-la, 0.0) + jnp.log1p(jnp.exp(-jnp.abs(la)))
    neg_kl = _K1 * sig - 0.5 * sp - _K1                    # pad elements -> exactly 0
    kl_part = -jnp.sum(jnp.sum(neg_kl, axis=1, keepdims=True),
                       axis=0, keepdims=True)              # (1, 1)

    # scalars = [train_size / n, kl_weight]  (fold the mean into one scale)
    acc_ref[...] += ce_part * scalars_ref[0] + scalars_ref[1] * kl_part

    # ---- per-core finalize: write this core's partial to its output block ---
    @pl.when(i == pl.num_programs(1) - 1)
    def _finalize():
        r = jax.lax.broadcasted_iota(jnp.int32, out_ref.shape, 0)
        c = jax.lax.broadcasted_iota(jnp.int32, out_ref.shape, 1)
        out_ref[...] = jnp.where((r == 0) & (c == 0), acc_ref[...], 0.0)


def sgvlb_forward(logits, targets, log_alphas, train_size, kl_weight=0.0,
                  tile_rows=None):
    """Fused SGVLB forward: one pallas_call for CE + KL; tiny sum-combine outside."""
    n, c = logits.shape
    itemsize = jnp.dtype(logits.dtype).itemsize
    sub = {4: 8, 2: 16, 1: 32}.get(itemsize, 8)            # sublane multiple per dtype

    # ---- generation-aware VMEM budget & row-tile size -----------------------
    try:
        vmem_cap = int(getattr(pltpu.get_tpu_info(), "vmem_capacity_bytes",
                               64 << 20))
    except Exception:  # pragma: no cover - conservative fallback
        vmem_cap = 64 << 20
    vmem_limit = max(32 << 20, min((vmem_cap * 3) // 4, 100 << 20))

    if tile_rows is not None:
        tn = max(sub, _round_up(int(tile_rows), sub))
    else:
        # VMEM cost per row is lane-padded to 128; keep one tile (plus its f32
        # temps and double-buffering) well inside the scoped limit.
        lane_row_bytes = _round_up(c, 128) * 4
        tile_budget = max(1 << 20, vmem_limit // 16)
        tn = max(sub, (tile_budget // lane_row_bytes) // sub * sub)
        tn = min(tn, 4096)
    tn = int(min(tn, _round_up(n, sub)))

    num_tiles = (n + tn - 1) // tn
    p_cores = 2 if num_tiles >= 2 else 1                   # v7x: one per TensorCore
    tiles_per_core = (num_tiles + p_cores - 1) // p_cores
    grid = (p_cores, tiles_per_core)
    grid_total = p_cores * tiles_per_core
    last_tile = num_tiles - 1

    # ---- pack every log_alpha lane-dense, one (rk, 128) chunk per grid step -
    flats = [jnp.asarray(la, jnp.float32).reshape(-1) for la in log_alphas]
    total = int(sum(int(f.shape[0]) for f in flats))
    rows_needed = (total + 127) // 128
    rk = max(8, _round_up(-(-rows_needed // grid_total), 8))
    r_total = rk * grid_total
    base = jnp.concatenate(flats) if flats else jnp.zeros((0,), jnp.float32)
    packed = jnp.concatenate(
        [base, jnp.full((r_total * 128 - total,), _PAD_VALUE, jnp.float32)]
    ).reshape(r_total, 128)

    tgt = targets.astype(jnp.int32).reshape(n, 1)
    scalars = jnp.array([float(train_size) / float(n), kl_weight],
                        dtype=jnp.float32)

    kernel = functools.partial(_sgvlb_kernel, n_rows=n, tile_rows=tn,
                               tiles_per_core=tiles_per_core)

    out = pl.pallas_call(
        kernel,
        out_shape=jax.ShapeDtypeStruct((8 * p_cores, 128), jnp.float32),
        grid=grid,
        in_specs=[
            # logits / targets: row tiles; phantom tiles clamp to the last real
            # block (their rows are masked out in-kernel anyway).
            pl.BlockSpec((tn, c),
                         lambda p, i: (jnp.minimum(p * tiles_per_core + i,
                                                   last_tile), 0)),
            pl.BlockSpec((tn, 1),
                         lambda p, i: (jnp.minimum(p * tiles_per_core + i,
                                                   last_tile), 0)),
            # packed log_alpha: one chunk per grid step (exactly grid_total chunks)
            pl.BlockSpec((rk, 128), lambda p, i: (p * tiles_per_core + i, 0)),
            # [train_size/n, kl_weight] in SMEM (no recompile on KL annealing)
            pl.BlockSpec(memory_space=pltpu.MemorySpace.SMEM),
        ],
        out_specs=pl.BlockSpec((8, 128), lambda p, i: (p, 0)),
        scratch_shapes=[pltpu.VMEM((1, 1), jnp.float32)],   # per-core running sum
        compiler_params=pltpu.CompilerParams(
            dimension_semantics=("parallel", "arbitrary"),
            vmem_limit_bytes=int(vmem_limit),
        ),
    )(logits, tgt, packed, scalars)

    # Each core wrote its partial at [8*p, 0]; everything else is exactly 0.
    return jnp.sum(out)


# ---------------------------------------------------------------------------
# Pure-JAX reference for correctness checking
# ---------------------------------------------------------------------------
def _sgvlb_reference(logits, targets, log_alphas, train_size, kl_weight):
    logits = logits.astype(jnp.float32)
    logp = jax.nn.log_softmax(logits, axis=-1)
    nll = -jnp.take_along_axis(logp, targets.reshape(-1, 1).astype(jnp.int32),
                               axis=-1)
    ce = jnp.mean(nll)
    kl = jnp.float32(0.0)
    for la in log_alphas:
        la = la.astype(jnp.float32)
        neg = (_K1 * jax.nn.sigmoid(_K2 + _K3 * la)
               - 0.5 * jax.nn.softplus(-la) - _K1)
        kl = kl - jnp.sum(neg)
    return ce * jnp.float32(train_size) + jnp.float32(kl_weight) * kl


if __name__ == "__main__":
    key = jax.random.PRNGKey(0)
    k_logits, k_tgt, k_a1, k_a2 = jax.random.split(key, 4)

    N, C = 300, 10                     # ragged vs. the 64-row demo tile
    logits = jax.random.normal(k_logits, (N, C), dtype=jnp.float32)
    targets = jax.random.randint(k_tgt, (N,), 0, C, dtype=jnp.int32)

    # synthetic SVDO net: features=[LinearSVDO(32->64)], classifier=[LinearSVDO(64->10)]
    log_alpha_1 = jax.random.normal(k_a1, (64, 32), dtype=jnp.float32) - 3.0
    log_alpha_2 = jax.random.normal(k_a2, (10, 64), dtype=jnp.float32) - 3.0
    log_alphas = [log_alpha_1, log_alpha_2]

    train_size = 60000
    kl_weight = 0.1

    # Small tile_rows override so this small demo exercises the multi-tile,
    # ragged-tail, phantom-tile and two-core-partial code paths.
    loss = sgvlb_forward(logits, targets, log_alphas, train_size, kl_weight,
                         tile_rows=64)
    loss = jax.block_until_ready(loss)

    ref = _sgvlb_reference(logits, targets, log_alphas, train_size, kl_weight)
    assert jnp.isfinite(loss), "loss is not finite"
    assert jnp.allclose(loss, ref, rtol=1e-4), (float(loss), float(ref))
    print("KERNEL_OK")
</pallas_src>

<mosaic_0001>
module attributes {stable_mosaic.version = 11 : i64} {
  func.func @_sgvlb_kernel(%arg0: i32, %arg1: i32, %arg2: memref<64x10xf32, #tpu.memory_space<vmem>>, %arg3: memref<64x1xi32, #tpu.memory_space<vmem>>, %arg4: memref<8x128xf32, #tpu.memory_space<vmem>>, %arg5: memref<2xf32, #tpu.memory_space<smem>>, %arg6: memref<8x128xf32, #tpu.memory_space<vmem>>, %arg7: memref<1x1xf32, #tpu.memory_space<vmem>>) attributes {dimension_semantics = [#tpu.dimension_semantics<parallel>, #tpu.dimension_semantics<arbitrary>], iteration_bounds = array<i64: 2, 3>, scalar_prefetch = 0 : i64, scratch_operands = 1 : i64, tpu.core_type = #tpu.core_type<tc>, window_params = [{transform_indices = @transform_0, window_bounds = array<i64: 64, 10>}, {transform_indices = @transform_1, window_bounds = array<i64: 64, 1>}, {transform_indices = @transform_2, window_bounds = array<i64: 8, 128>}, {transform_indices = @transform_3, window_bounds = array<i64: 2>}, {transform_indices = @transform_4, window_bounds = array<i64: 8, 128>}]} {
    %c0_i32 = arith.constant 0 : i32
    %0 = arith.cmpi eq, %arg1, %c0_i32 : i32
    %1 = arith.extui %0 : i1 to i32
    %c0_i32_0 = arith.constant 0 : i32
    %2 = arith.cmpi ne, %1, %c0_i32_0 : i32
    scf.if %2 {
      %cst_32 = arith.constant 0.000000e+00 : f32
      %87 = vector.broadcast %cst_32 : f32 to vector<1x1xf32>
      %c0_33 = arith.constant 0 : index
      %c0_34 = arith.constant 0 : index
      %88 = vector.load %arg7[%c0_33, %c0_34] : memref<1x1xf32, #tpu.memory_space<vmem>>, vector<1x1xf32>
      tpu.vector_store %arg7[%c0_33, %c0_34], %87 {strides = array<i32>} : memref<1x1xf32, #tpu.memory_space<vmem>>, vector<1x1xf32>,
    } else {
    }
    %c3_i32 = arith.constant 3 : i32
    %3 = arith.muli %arg0, %c3_i32 : i32
    %4 = arith.addi %3, %arg1 : i32
    %c64_i32 = arith.constant 64 : i32
    %5 = arith.muli %4, %c64_i32 : i32
    %6 = tpu.iota {dimensions = array<i32: 0>} : vector<64x1xi32>
    %7 = vector.broadcast %5 : i32 to vector<64x1xi32>
    %8 = arith.addi %7, %6 : vector<64x1xi32>
    %c300_i32 = arith.constant 300 : i32
    %9 = vector.broadcast %c300_i32 : i32 to vector<64x1xi32>
    %10 = arith.cmpi slt, %8, %9 : vector<64x1xi32>
    %c0 = arith.constant 0 : index
    %c0_1 = arith.constant 0 : index
    %11 = vector.load %arg2[%c0, %c0_1] : memref<64x10xf32, #tpu.memory_space<vmem>>, vector<64x10xf32>
    %cst = arith.constant 0.000000e+00 : f32
    %12 = vector.shape_cast %10 : vector<64x1xi1> to vector<64x1xi1>
    %13 = vector.broadcast %12 : vector<64x1xi1> to vector<64x10xi1>
    %14 = vector.broadcast %cst : f32 to vector<64x10xf32>
    %15 = arith.select %13, %11, %14 : vector<64x10xi1>, vector<64x10xf32>
    %c0_2 = arith.constant 0 : index
    %c0_3 = arith.constant 0 : index
    %16 = vector.load %arg3[%c0_2, %c0_3] : memref<64x1xi32, #tpu.memory_space<vmem>>, vector<64x1xi32>
    %cst_4 = arith.constant dense<0xFF800000> : vector<64xf32>
    %17 = vector.multi_reduction <maximumf>, %15, %cst_4 [1] : vector<64x10xf32> to vector<64xf32>
    %18 = vector.shape_cast %17 : vector<64xf32> to vector<64x1xf32>
    %19 = vector.broadcast %18 : vector<64x1xf32> to vector<64x10xf32>
    %20 = arith.subf %15, %19 : vector<64x10xf32>
    %21 = math.exp %20 : vector<64x10xf32>
    %cst_5 = arith.constant dense<0.000000e+00> : vector<64xf32>
    %22 = vector.multi_reduction <add>, %21, %cst_5 [1] : vector<64x10xf32> to vector<64xf32>
    %23 = vector.shape_cast %22 : vector<64xf32> to vector<64x1xf32>
    %24 = math.log %23 : vector<64x1xf32>
    %25 = arith.addf %18, %24 : vector<64x1xf32>
    %26 = tpu.iota {dimensions = array<i32: 1>} : vector<1x10xi32>
    %27 = vector.broadcast %26 : vector<1x10xi32> to vector<64x10xi32>
    %28 = vector.broadcast %16 : vector<64x1xi32> to vector<64x10xi32>
    %29 = arith.cmpi eq, %27, %28 : vector<64x10xi32>
    %cst_6 = arith.constant 0.000000e+00 : f32
    %30 = vector.broadcast %cst_6 : f32 to vector<64x10xf32>
    %31 = arith.select %29, %15, %30 : vector<64x10xi1>, vector<64x10xf32>
    %cst_7 = arith.constant dense<0.000000e+00> : vector<64xf32>
    %32 = vector.multi_reduction <add>, %31, %cst_7 [1] : vector<64x10xf32> to vector<64xf32>
    %33 = vector.shape_cast %32 : vector<64xf32> to vector<64x1xf32>
    %34 = arith.subf %25, %33 : vector<64x1xf32>
    %cst_8 = arith.constant 0.000000e+00 : f32
    %35 = vector.broadcast %cst_8 : f32 to vector<64x1xf32>
    %36 = arith.select %10, %34, %35 : vector<64x1xi1>, vector<64x1xf32>
    %cst_9 = arith.constant dense<0.000000e+00> : vector<1xf32>
    %37 = vector.multi_reduction <add>, %36, %cst_9 [0] : vector<64x1xf32> to vector<1xf32>
    %38 = vector.shape_cast %37 : vector<1xf32> to vector<1x1xf32>
    %c0_10 = arith.constant 0 : index
    %c0_11 = arith.constant 0 : index
    %39 = vector.load %arg4[%c0_10, %c0_11] : memref<8x128xf32, #tpu.memory_space<vmem>>, vector<8x128xf32>
    %cst_12 = arith.constant 1.486950e+00 : f32
    %40 = vector.broadcast %cst_12 : f32 to vector<8x128xf32>
    %41 = arith.mulf %40, %39 : vector<8x128xf32>
    %cst_13 = arith.constant 1.873200e+00 : f32
    %42 = vector.broadcast %cst_13 : f32 to vector<8x128xf32>
    %43 = arith.addf %42, %41 : vector<8x128xf32>
    %cst_14 = arith.constant 0.000000e+00 : f32
    %44 = vector.broadcast %cst_14 : f32 to vector<8x128xf32>
    %45 = arith.subf %44, %43 : vector<8x128xf32>
    %46 = math.exp %45 : vector<8x128xf32>
    %cst_15 = arith.constant 1.000000e+00 : f32
    %47 = vector.broadcast %cst_15 : f32 to vector<8x128xf32>
    %48 = arith.addf %47, %46 : vector<8x128xf32>
    %cst_16 = arith.constant 1.000000e+00 : f32
    %49 = vector.broadcast %cst_16 : f32 to vector<8x128xf32>
    %50 = arith.divf %49, %48 : vector<8x128xf32>
    %cst_17 = arith.constant 0.000000e+00 : f32
    %51 = vector.broadcast %cst_17 : f32 to vector<8x128xf32>
    %52 = arith.subf %51, %39 : vector<8x128xf32>
    %cst_18 = arith.constant 0.000000e+00 : f32
    %53 = vector.broadcast %cst_18 : f32 to vector<8x128xf32>
    %54 = arith.maximumf %52, %53 : vector<8x128xf32>
    %55 = math.absf %39 : vector<8x128xf32>
    %cst_19 = arith.constant 0.000000e+00 : f32
    %56 = vector.broadcast %cst_19 : f32 to vector<8x128xf32>
    %57 = arith.subf %56, %55 : vector<8x128xf32>
    %58 = math.exp %57 : vector<8x128xf32>
    %59 = math.log1p %58 : vector<8x128xf32>
    %60 = arith.addf %54, %59 : vector<8x128xf32>
    %cst_20 = arith.constant 6.357600e-01 : f32
    %61 = vector.broadcast %cst_20 : f32 to vector<8x128xf32>
    %62 = arith.mulf %61, %50 : vector<8x128xf32>
    %cst_21 = arith.constant 5.000000e-01 : f32
    %63 = vector.broadcast %cst_21 : f32 to vector<8x128xf32>
    %64 = arith.mulf %63, %60 : vector<8x128xf32>
    %65 = arith.subf %62, %64 : vector<8x128xf32>
    %cst_22 = arith.constant 6.357600e-01 : f32
    %66 = vector.broadcast %cst_22 : f32 to vector<8x128xf32>
    %67 = arith.subf %65, %66 : vector<8x128xf32>
    %cst_23 = arith.constant dense<0.000000e+00> : vector<8xf32>
    %68 = vector.multi_reduction <add>, %67, %cst_23 [1] : vector<8x128xf32> to vector<8xf32>
    %69 = vector.shape_cast %68 : vector<8xf32> to vector<8x1xf32>
    %cst_24 = arith.constant dense<0.000000e+00> : vector<1xf32>
    %70 = vector.multi_reduction <add>, %69, %cst_24 [0] : vector<8x1xf32> to vector<1xf32>
    %71 = vector.shape_cast %70 : vector<1xf32> to vector<1x1xf32>
    %cst_25 = arith.constant 0.000000e+00 : f32
    %72 = vector.broadcast %cst_25 : f32 to vector<1x1xf32>
    %73 = arith.subf %72, %71 : vector<1x1xf32>
    %c0_26 = arith.constant 0 : index
    %c0_27 = arith.constant 0 : index
    %74 = vector.load %arg7[%c0_26, %c0_27] : memref<1x1xf32, #tpu.memory_space<vmem>>, vector<1x1xf32>
    %c0_28 = arith.constant 0 : index
    %75 = memref.load %arg5[%c0_28] : memref<2xf32, #tpu.memory_space<smem>>
    %76 = vector.broadcast %75 : f32 to vector<1x1xf32>
    %77 = arith.mulf %38, %76 : vector<1x1xf32>
    %c1 = arith.constant 1 : index
    %78 = memref.load %arg5[%c1] : memref<2xf32, #tpu.memory_space<smem>>
    %79 = vector.broadcast %78 : f32 to vector<1x1xf32>
    %80 = arith.mulf %79, %73 : vector<1x1xf32>
    %81 = arith.addf %77, %80 : vector<1x1xf32>
    %82 = arith.addf %74, %81 : vector<1x1xf32>
    %c0_29 = arith.constant 0 : index
    %c0_30 = arith.constant 0 : index
    %83 = vector.load %arg7[%c0_29, %c0_30] : memref<1x1xf32, #tpu.memory_space<vmem>>, vector<1x1xf32>
    tpu.vector_store %arg7[%c0_29, %c0_30], %82 {strides = array<i32>} : memref<1x1xf32, #tpu.memory_space<vmem>>, vector<1x1xf32>,
    %c2_i32 = arith.constant 2 : i32
    %84 = arith.cmpi eq, %arg1, %c2_i32 : i32
    %85 = arith.extui %84 : i1 to i32
    %c0_i32_31 = arith.constant 0 : i32
    %86 = arith.cmpi ne, %85, %c0_i32_31 : i32
    scf.if %86 {
      %87 = tpu.iota {dimensions = array<i32: 0>} : vector<8x128xi32>
      %88 = tpu.iota {dimensions = array<i32: 1>} : vector<8x128xi32>
      %c0_i32_32 = arith.constant 0 : i32
      %89 = vector.broadcast %c0_i32_32 : i32 to vector<8x128xi32>
      %90 = arith.cmpi eq, %87, %89 : vector<8x128xi32>
      %c0_i32_33 = arith.constant 0 : i32
      %91 = vector.broadcast %c0_i32_33 : i32 to vector<8x128xi32>
      %92 = arith.cmpi eq, %88, %91 : vector<8x128xi32>
      %93 = arith.andi %90, %92 : vector<8x128xi1>
      %c0_34 = arith.constant 0 : index
      %c0_35 = arith.constant 0 : index
      %94 = vector.load %arg7[%c0_34, %c0_35] : memref<1x1xf32, #tpu.memory_space<vmem>>, vector<1x1xf32>
      %cst_36 = arith.constant 0.000000e+00 : f32
      %95 = vector.shape_cast %94 : vector<1x1xf32> to vector<1x1xf32>
      %96 = vector.broadcast %95 : vector<1x1xf32> to vector<8x128xf32>
      %97 = vector.broadcast %cst_36 : f32 to vector<8x128xf32>
      %98 = arith.select %93, %96, %97 : vector<8x128xi1>, vector<8x128xf32>
      %c0_37 = arith.constant 0 : index
      %c0_38 = arith.constant 0 : index
      %99 = vector.load %arg6[%c0_37, %c0_38] : memref<8x128xf32, #tpu.memory_space<vmem>>, vector<8x128xf32>
      tpu.vector_store %arg6[%c0_37, %c0_38], %98 {strides = array<i32>} : memref<8x128xf32, #tpu.memory_space<vmem>>, vector<8x128xf32>,
    } else {
    }
    return
  }
  func.func @transform_0(%arg0: i32, %arg1: i32) -> (i32, i32) {
    %c3_i32 = arith.constant 3 : i32
    %0 = arith.muli %arg0, %c3_i32 : i32
    %1 = arith.addi %0, %arg1 : i32
    %c4_i32 = arith.constant 4 : i32
    %2 = arith.minsi %1, %c4_i32 : i32
    %c0_i32 = arith.constant 0 : i32
    %c0_i32_0 = arith.constant 0 : i32
    return %2, %c0_i32 : i32, i32
  }
  func.func @transform_1(%arg0: i32, %arg1: i32) -> (i32, i32) {
    %c3_i32 = arith.constant 3 : i32
    %0 = arith.muli %arg0, %c3_i32 : i32
    %1 = arith.addi %0, %arg1 : i32
    %c4_i32 = arith.constant 4 : i32
    %2 = arith.minsi %1, %c4_i32 : i32
    %c0_i32 = arith.constant 0 : i32
    %c0_i32_0 = arith.constant 0 : i32
    return %2, %c0_i32 : i32, i32
  }
  func.func @transform_2(%arg0: i32, %arg1: i32) -> (i32, i32) {
    %c3_i32 = arith.constant 3 : i32
    %0 = arith.muli %arg0, %c3_i32 : i32
    %1 = arith.addi %0, %arg1 : i32
    %c0_i32 = arith.constant 0 : i32
    %c0_i32_0 = arith.constant 0 : i32
    return %1, %c0_i32 : i32, i32
  }
  func.func @transform_3(%arg0: i32, %arg1: i32) -> i32 {
    %c0_i32 = arith.constant 0 : i32
    %c0_i32_0 = arith.constant 0 : i32
    return %c0_i32 : i32
  }
  func.func @transform_4(%arg0: i32, %arg1: i32) -> (i32, i32) {
    %c0_i32 = arith.constant 0 : i32
    %c0_i32_0 = arith.constant 0 : i32
    return %arg0, %c0_i32 : i32, i32
  }
}

</mosaic_0001>

<llo_original>
// kernel: tpu_custom_call.1
$region0: #{tpu_custom_call.1}
  #allocation0 [shape = 'u32[]', space=smem, size = 0x4, offset = 0x4, fixed_abs, tag = 'smem constant byte address 0x4 - core index']
  #allocation1 [shape = 'u32[72,128]{1,0:T(1,128)}', space=vmem, size = 0x9000, scoped, tag = 'internal scratch']
  #allocation2 [shape = 'f32[1,1]{1,0:T(1,128)}', space=vmem, size = 0x200, scoped, tag = 'scratch operand']
  %s0 = inlined_call_operand.vmem [shape: f32[300,10], index: 0, kind: input, shape index: {}]
  %s1 = inlined_call_operand.vmem [shape: s32[300,1], index: 1, kind: input, shape index: {}]
  %s2 = inlined_call_operand.vmem [shape: f32[48,128], index: 2, kind: input, shape index: {}]
  %s3 = inlined_call_operand.vmem [shape: f32[2], index: 3, kind: input, shape index: {}]
  %s4 = inlined_call_operand.hbm [shape: f32[16,128], index: 4, kind: output, shape index: {}]
  %s5 = sld [smem:[#allocation0]]
  $region61: #{tpu_custom_call.1} parent=0
    _
  %s7 = ssub.s32 1, %s5
  %s8 = scalar_select 0, %s7, %s5
  $region1: #{tpu_custom_call.1} parent=0
    #allocation3 [shape = 'u8[512]{0}', space=smem, size = 0x200, scoped, tag = 'input window, operand 3, single buffered']
    #allocation4 [shape = 's32[2]{0}', space=sflag, size = 0x8, scoped, tag = 'scoped memory for tpu_custom_call.1']
    #allocation5 [shape = 's32[2]{0}', space=sflag, size = 0x8, scoped, tag = 'scoped memory for tpu_custom_call.1']
    #allocation6 [shape = 'u8[8192]{0}', space=vmem, size = 0x2000, scoped, tag = 'output window, operand 0']
    %9 = vsyncpa [#allocation5], 0
    %10 = vsyncpa [#allocation4], 0
    %s11 = scalar_lea.sflag [#allocation4], 1
    %12 = vsyncpa %s11, 0
    loop: start=0, step=1, limit=8
    $region2: #{tpu_custom_call.1} parent=1 // loop_pre_header
      _
    $region3: #{tpu_custom_call.1} parent=1 // loop_header
      %s14 = sphi 0, %s18
      %p15 = scmp.ge.s32.totalorder %s14, 8
      %s21 = sphi 0, %s33
      %s22 = sphi 0, %s29
      %s23 = sphi 0, %s21
      %s24 = sphi 0, %s22
      %s25 = sphi 0, %s23
      %s26 = sphi 0, %s24
      %s44 = sphi 0, %s46
      %s47 = sphi 0, %s44
      %s48 = sphi 0, %s47
      %s64 = sphi 0, %s48
      %s78 = sphi 0, %s80
      %s81 = sphi 0, %s78
      %s82 = sphi 0, %s81
      %s98 = sphi 0, %s82
      %s108 = sphi 0, %s110
      %s111 = sphi 0, %s108
      %s112 = sphi 0, %s111
      %s128 = sphi 0, %s112
      %s132 = sphi 0, %s132
      %s134 = sphi 0, %s132
      %s135 = sphi 0, %s134
      %s149 = sphi 0, %s135
      %s155 = sphi 0, %s157
      %s158 = sphi 0, %s155
      %s159 = sphi 0, %s158
      %s175 = sphi 0, %s159
    $region4: #{tpu_custom_call.1} parent=1 // loop_header_branch
      %17 = sbr.rel (%p15) target = $region8
    $region5: #{tpu_custom_call.1} parent=1 // loop_body
      %s19 = ssub.s32 %s14, 1
      %s20 = ssub.s32 %s14, 2
      %s27 = sadd.s32 1, %s22
      %p28 = scmp.ge.s32.totalorder %s27, 3
      %s29 = scalar_select %p28, 0, %s27
      %s30 = sadd.s32 1, %s21
      %s31 = scalar_select %p28, %s30, %s21
      %p32 = scmp.ge.s32.totalorder %s31, 2
      %s33 = scalar_select %p32, 0, %s31
      %s34 = smul.u32 %s21, 3
      %s35 = sadd.s32 %s34, %s22
      %p36 = scmp.lt.s32.totalorder %s35, 4
      %s37 = scalar_select %p36, %s35, 4
      %s38 = smul.u32 %s33, 3
      %s39 = sadd.s32 %s38, %s29
      %p40 = scmp.lt.s32.totalorder %s39, 4
      %s41 = scalar_select %p40, %s39, 4
      %s42 = ssub.s32 %s37, %s41
      %p43 = scmp.eq.s32.totalorder %s42, 0
      %s45 = sadd.s32 %s44, 1
      %s46 = scalar_select %p43, %s44, %s45
      %p49 = pneg %p43
      %p50 = scmp.eq.s32.totalorder %s14, 5
      %p51 = por %p49, %p50
      %p52 = scmp.ne.s32.totalorder %s44, %s47
      %p53 = scmp.eq.s32.totalorder %s14, 0
      %p54 = por %p52, %p53
      %p55 = scmp.ne.s32.totalorder %s44, %s47
      %p56 = scmp.eq.s32.totalorder %s19, 5
      %p57 = por %p55, %p56
      %p58 = scmp.ne.s32.totalorder %s47, %s48
      %p59 = scmp.eq.s32.totalorder %s19, 0
      %p60 = por %p58, %p59
      %p61 = scmp.ne.s32.totalorder %s47, %s48
      %p62 = scmp.eq.s32.totalorder %s20, 5
      %p63 = por %p61, %p62
      %p65 = scmp.ne.s32.totalorder %s48, %s64
      %p66 = scmp.eq.s32.totalorder %s20, 0
      %p67 = por %p65, %p66
      %s68 = smul.u32 %s21, 3
      %s69 = sadd.s32 %s68, %s22
      %p70 = scmp.lt.s32.totalorder %s69, 4
      %s71 = scalar_select %p70, %s69, 4
      %s72 = smul.u32 %s33, 3
      %s73 = sadd.s32 %s72, %s29
      %p74 = scmp.lt.s32.totalorder %s73, 4
      %s75 = scalar_select %p74, %s73, 4
      %s76 = ssub.s32 %s71, %s75
      %p77 = scmp.eq.s32.totalorder %s76, 0
      %s79 = sadd.s32 %s78, 1
      %s80 = scalar_select %p77, %s78, %s79
      %p83 = pneg %p77
      %p84 = scmp.eq.s32.totalorder %s14, 5
      %p85 = por %p83, %p84
      %p86 = scmp.ne.s32.totalorder %s78, %s81
      %p87 = scmp.eq.s32.totalorder %s14, 0
      %p88 = por %p86, %p87
      %p89 = scmp.ne.s32.totalorder %s78, %s81
      %p90 = scmp.eq.s32.totalorder %s19, 5
      %p91 = por %p89, %p90
      %p92 = scmp.ne.s32.totalorder %s81, %s82
      %p93 = scmp.eq.s32.totalorder %s19, 0
      %p94 = por %p92, %p93
      %p95 = scmp.ne.s32.totalorder %s81, %s82
      %p96 = scmp.eq.s32.totalorder %s20, 5
      %p97 = por %p95, %p96
      %p99 = scmp.ne.s32.totalorder %s82, %s98
      %p100 = scmp.eq.s32.totalorder %s20, 0
      %p101 = por %p99, %p100
      %s102 = smul.u32 %s21, 3
      %s103 = sadd.s32 %s102, %s22
      %s104 = smul.u32 %s33, 3
      %s105 = sadd.s32 %s104, %s29
      %s106 = ssub.s32 %s103, %s105
      %p107 = scmp.eq.s32.totalorder %s106, 0
      %s109 = sadd.s32 %s108, 1
      %s110 = scalar_select %p107, %s108, %s109
      %p113 = pneg %p107
      %p114 = scmp.eq.s32.totalorder %s14, 5
      %p115 = por %p113, %p114
      %p116 = scmp.ne.s32.totalorder %s108, %s111
      %p117 = scmp.eq.s32.totalorder %s14, 0
      %p118 = por %p116, %p117
      %p119 = scmp.ne.s32.totalorder %s108, %s111
      %p120 = scmp.eq.s32.totalorder %s19, 5
      %p121 = por %p119, %p120
      %p122 = scmp.ne.s32.totalorder %s111, %s112
      %p123 = scmp.eq.s32.totalorder %s19, 0
      %p124 = por %p122, %p123
      %p125 = scmp.ne.s32.totalorder %s111, %s112
      %p126 = scmp.eq.s32.totalorder %s20, 5
      %p127 = por %p125, %p126
      %p129 = scmp.ne.s32.totalorder %s112, %s128
      %p130 = scmp.eq.s32.totalorder %s20, 0
      %p131 = por %p129, %p130
      %s133 = sadd.s32 %s132, 1
      %p136 = scmp.eq.s32.totalorder %s14, 5
      %p137 = scmp.ne.s32.totalorder %s132, %s134
      %p138 = scmp.eq.s32.totalorder %s14, 0
      %p139 = por %p137, %p138
      %p140 = scmp.ne.s32.totalorder %s132, %s134
      %p141 = scmp.eq.s32.totalorder %s19, 5
      %p142 = por %p140, %p141
      %p143 = scmp.ne.s32.totalorder %s134, %s135
      %p144 = scmp.eq.s32.totalorder %s19, 0
      %p145 = por %p143, %p144
      %p146 = scmp.ne.s32.totalorder %s134, %s135
      %p147 = scmp.eq.s32.totalorder %s20, 5
      %p148 = por %p146, %p147
      %p150 = scmp.ne.s32.totalorder %s135, %s149
      %p151 = scmp.eq.s32.totalorder %s20, 0
      %p152 = por %p150, %p151
      %s153 = ssub.s32 %s21, %s33
      %p154 = scmp.eq.s32.totalorder %s153, 0
      %s156 = sadd.s32 %s155, 1
      %s157 = scalar_select %p154, %s155, %s156
      %p160 = pneg %p154
      %p161 = scmp.eq.s32.totalorder %s14, 5
      %p162 = por %p160, %p161
      %p163 = scmp.ne.s32.totalorder %s155, %s158
      %p164 = scmp.eq.s32.totalorder %s14, 0
      %p165 = por %p163, %p164
      %p166 = scmp.ne.s32.totalorder %s155, %s158
      %p167 = scmp.eq.s32.totalorder %s19, 5
      %p168 = por %p166, %p167
      %p169 = scmp.ne.s32.totalorder %s158, %s159
      %p170 = scmp.eq.s32.totalorder %s19, 0
      %p171 = por %p169, %p170
      %p172 = scmp.ne.s32.totalorder %s158, %s159
      %p173 = scmp.eq.s32.totalorder %s20, 5
      %p174 = por %p172, %p173
      %p176 = scmp.ne.s32.totalorder %s159, %s175
      %p177 = scmp.eq.s32.totalorder %s20, 0
      %p178 = por %p176, %p177
      %p179 = scmp.le.s32.totalorder 1, %s14
      %p180 = scmp.lt.s32.totalorder %s14, 7
      %p181 = pnand %p179, %p180
      %p182 = pneg %p181
      // Predicated region
      $region9: #{tpu_custom_call.1} parent=5 // pred_check
        _
      $region10: #{tpu_custom_call.1} parent=5 // pred_check_branch
        %184 = sbr.rel (%p181) target = $region12
      $region11: #{tpu_custom_call.1} parent=5 // pred_region
        %s185 = ssub.s32 %s14, 1
        // Predicated region
        $region13: #{tpu_custom_call.1} parent=11 // pred_check
          %p186 = pneg %p145
        $region14: #{tpu_custom_call.1} parent=11 // pred_check_branch
          %188 = sbr.rel (%p186) target = $region16
        $region15: #{tpu_custom_call.1} parent=11 // pred_region
          %190 = vsyncadd [#allocation5], 0
          %s192 = sshll.u32 %s3, 4
          %s193 = int_to_ptr.vmem [resolvable:$true] %s192
          %195 = dma.vmem_to_smem %s193, 16, [#allocation3], [#allocation5]
        $region16: #{tpu_custom_call.1} parent=11 // pred_fallthru
          _
      $region12: #{tpu_custom_call.1} parent=5 // pred_fallthru
        _
      %p196 = scmp.lt.s32.totalorder %s14, 6
      // Predicated region
      $region17: #{tpu_custom_call.1} parent=5 // pred_check
        %p197 = pneg %p196
      $region18: #{tpu_custom_call.1} parent=5 // pred_check_branch
        %199 = sbr.rel (%p197) target = $region20
      $region19: #{tpu_custom_call.1} parent=5 // pred_region
        // Predicated region
        $region21: #{tpu_custom_call.1} parent=19 // pred_check
          %p200 = pneg %p54
        $region22: #{tpu_custom_call.1} parent=19 // pred_check_branch
          %202 = sbr.rel (%p200) target = $region24
        $region23: #{tpu_custom_call.1} parent=19 // pred_region
          %s203 = smul.u32 %s21, 3
          %s204 = sadd.s32 %s203, %s22
          %p205 = scmp.lt.s32.totalorder %s204, 4
          %s206 = scalar_select %p205, %s204, 4
          %s207 = smul.u32 8, %s206
          %s208 = ssub.s32 38, %s207
          %p209 = scmp.lt.s32.totalorder %s208, 8
          %s210 = scalar_select %p209, %s208, 8
          %s211 = smul.u32 8, %s210
          %p212 = scmp.lt.s32.totalorder %s207, 37
          %s213 = scalar_select %p212, %s207, 37
          %s214 = smul.addr %s213, 8
          %s215 = scalar_lea.vmem %s0, %s214
          %s216 = smul.u32 %s21, 3
          %s217 = sadd.s32 %s216, %s22
          %p218 = scmp.lt.s32.totalorder %s217, 4
          %s219 = scalar_select %p218, %s217, 4
          %s220 = smul.u32 8, %s219
          %s221 = ssub.s32 38, %s220
          %p222 = scmp.lt.s32.totalorder %s221, 8
          %s223 = scalar_select %p222, %s221, 8
          %s224 = smul.u32 8, %s223
        $region24: #{tpu_custom_call.1} parent=19 // pred_fallthru
          _
        // Predicated region
        $region25: #{tpu_custom_call.1} parent=19 // pred_check
          %p225 = pneg %p88
        $region26: #{tpu_custom_call.1} parent=19 // pred_check_branch
          %227 = sbr.rel (%p225) target = $region28
        $region27: #{tpu_custom_call.1} parent=19 // pred_region
          %s228 = smul.u32 %s21, 3
          %s229 = sadd.s32 %s228, %s22
          %p230 = scmp.lt.s32.totalorder %s229, 4
          %s231 = scalar_select %p230, %s229, 4
          %s232 = smul.u32 8, %s231
          %s233 = ssub.s32 38, %s232
          %p234 = scmp.lt.s32.totalorder %s233, 8
          %s235 = scalar_select %p234, %s233, 8
          %s236 = smul.u32 8, %s235
          %p237 = scmp.lt.s32.totalorder %s232, 37
          %s238 = scalar_select %p237, %s232, 37
          %s239 = smul.addr %s238, 8
          %s240 = scalar_lea.vmem %s1, %s239
          %s241 = smul.u32 %s21, 3
          %s242 = sadd.s32 %s241, %s22
          %p243 = scmp.lt.s32.totalorder %s242, 4
          %s244 = scalar_select %p243, %s242, 4
          %s245 = smul.u32 8, %s244
          %s246 = ssub.s32 38, %s245
          %p247 = scmp.lt.s32.totalorder %s246, 8
          %s248 = scalar_select %p247, %s246, 8
          %s249 = smul.u32 8, %s248
        $region28: #{tpu_custom_call.1} parent=19 // pred_fallthru
          _
        // Predicated region
        $region29: #{tpu_custom_call.1} parent=19 // pred_check
          %p250 = pneg %p118
        $region30: #{tpu_custom_call.1} parent=19 // pred_check_branch
          %252 = sbr.rel (%p250) target = $region32
        $region31: #{tpu_custom_call.1} parent=19 // pred_region
          %s253 = smul.u32 %s21, 3
          %s254 = sadd.s32 %s253, %s22
          %p255 = scmp.lt.s32.totalorder %s254, 5
          %s256 = scalar_select %p255, %s254, 5
          %s257 = smul.addr %s256, 8
          %s258 = scalar_lea.vmem %s2, %s257
          %s259 = smul.u32 %s21, 3
          %s260 = sadd.s32 %s259, %s22
        $region32: #{tpu_custom_call.1} parent=19 // pred_fallthru
          _
      $region20: #{tpu_custom_call.1} parent=5 // pred_fallthru
        _
      %p261 = scmp.le.s32.totalorder 1, %s14
      %p262 = scmp.lt.s32.totalorder %s14, 7
      %p263 = pnand %p261, %p262
      %p264 = pneg %p263
      // Predicated region
      $region33: #{tpu_custom_call.1} parent=5 // pred_check
        _
      $region34: #{tpu_custom_call.1} parent=5 // pred_check_branch
        %266 = sbr.rel (%p263) target = $region36
      $region35: #{tpu_custom_call.1} parent=5 // pred_region
        %s267 = ssub.s32 %s14, 1
        // Predicated region
        $region37: #{tpu_custom_call.1} parent=35 // pred_check
          %p268 = pneg %p145
        $region38: #{tpu_custom_call.1} parent=35 // pred_check_branch
          %270 = sbr.rel (%p268) target = $region40
        $region39: #{tpu_custom_call.1} parent=35 // pred_region
          %272 = dma.done [#allocation5], 16
        $region40: #{tpu_custom_call.1} parent=35 // pred_fallthru
          _
        %273 = sfence
        %s274 = smul.u32 %s23, 3
        %s275 = sadd.s32 %s274, %s24
        %p276 = scmp.lt.s32.totalorder %s275, 4
        %s277 = scalar_select %p276, %s275, 4
        %s278 = smul.u32 8, %s277
        %s279 = ssub.s32 38, %s278
        %p280 = scmp.lt.s32.totalorder %s279, 8
        %s281 = scalar_select %p280, %s279, 8
        %s282 = smul.u32 8, %s281
        %p283 = scmp.lt.s32.totalorder %s278, 37
        %s284 = scalar_select %p283, %s278, 37
        %s285 = smul.addr %s284, 8
        %s286 = scalar_lea.vmem %s0, %s285
        %p287 = pneg %p60
        %p288 = pneg %p57
        %s289 = smul.u32 %s23, 3
        %s290 = sadd.s32 %s289, %s24
        %p291 = scmp.lt.s32.totalorder %s290, 4
        %s292 = scalar_select %p291, %s290, 4
        %s293 = smul.u32 8, %s292
        %s294 = ssub.s32 38, %s293
        %p295 = scmp.lt.s32.totalorder %s294, 8
        %s296 = scalar_select %p295, %s294, 8
        %s297 = smul.u32 8, %s296
        %p298 = scmp.lt.s32.totalorder %s293, 37
        %s299 = scalar_select %p298, %s293, 37
        %s300 = smul.addr %s299, 8
        %s301 = scalar_lea.vmem %s1, %s300
        %p302 = pneg %p94
        %p303 = pneg %p91
        %s304 = smul.u32 %s23, 3
        %s305 = sadd.s32 %s304, %s24
        %p306 = scmp.lt.s32.totalorder %s305, 5
        %s307 = scalar_select %p306, %s305, 5
        %s308 = smul.addr %s307, 8
        %s309 = scalar_lea.vmem %s2, %s308
        %p310 = pneg %p124
        %p311 = pneg %p121
        %p312 = pneg %p145
        %p313 = pneg %p142
        %p314 = pneg %p171
        %p315 = pneg %p168
        %s316 = sand.u32 %s158, 1
        %s317 = scalar_lea.sflag [#allocation4], %s316
        %s318 = sand.u32 %s158, 1
        %s319 = smul.addr %s318, 8
        %s320 = scalar_lea.vmem [#allocation6], %s319
        %s321 = smul.u32 %s23, 3
        %s322 = sadd.s32 %s321, %s24
        %p323 = scmp.lt.s32.totalorder %s322, 4
        %s324 = scalar_select %p323, %s322, 4
        %s325 = smul.u32 8, %s324
        %s326 = ssub.s32 38, %s325
        %p327 = scmp.lt.s32.totalorder %s326, 8
        %s328 = scalar_select %p327, %s326, 8
        %s329 = smul.u32 8, %s328
        %p330 = scmp.lt.s32.totalorder %s325, 37
        %s331 = scalar_select %p330, %s325, 37
        %s332 = smul.addr %s331, 8
        %s333 = scalar_lea.vmem %s0, %s332
        %s334 = smul.u32 %s23, 3
        %s335 = sadd.s32 %s334, %s24
        %p336 = scmp.lt.s32.totalorder %s335, 4
        %s337 = scalar_select %p336, %s335, 4
        %s338 = smul.u32 8, %s337
        %s339 = ssub.s32 38, %s338
        %p340 = scmp.lt.s32.totalorder %s339, 8
        %s341 = scalar_select %p340, %s339, 8
        %s342 = smul.u32 8, %s341
        %s343 = smul.u32 %s23, 3
        %s344 = sadd.s32 %s343, %s24
        %p345 = scmp.lt.s32.totalorder %s344, 4
        %s346 = scalar_select %p345, %s344, 4
        %s347 = smul.u32 8, %s346
        %s348 = ssub.s32 38, %s347
        %p349 = scmp.lt.s32.totalorder %s348, 8
        %s350 = scalar_select %p349, %s348, 8
        %s351 = smul.u32 8, %s350
        %p352 = scmp.lt.s32.totalorder %s347, 37
        %s353 = scalar_select %p352, %s347, 37
        %s354 = smul.addr %s353, 8
        %s355 = scalar_lea.vmem %s1, %s354
        %s356 = smul.u32 %s23, 3
        %s357 = sadd.s32 %s356, %s24
        %p358 = scmp.lt.s32.totalorder %s357, 4
        %s359 = scalar_select %p358, %s357, 4
        %s360 = smul.u32 8, %s359
        %s361 = ssub.s32 38, %s360
        %p362 = scmp.lt.s32.totalorder %s361, 8
        %s363 = scalar_select %p362, %s361, 8
        %s364 = smul.u32 8, %s363
        %s365 = smul.u32 %s23, 3
        %s366 = sadd.s32 %s365, %s24
        %p367 = scmp.lt.s32.totalorder %s366, 5
        %s368 = scalar_select %p367, %s366, 5
        %s369 = smul.addr %s368, 8
        %s370 = scalar_lea.vmem %s2, %s369
        %s371 = smul.u32 %s23, 3
        %s372 = sadd.s32 %s371, %s24
        %p373 = scmp.eq.s32.totalorder %s24, 0
        // Predicated region
        $region41: #{tpu_custom_call.1} parent=35 // pred_check
          %p374 = pneg %p373
        $region42: #{tpu_custom_call.1} parent=35 // pred_check_branch
          %376 = sbr.rel (%p374) target = $region44
        $region43: #{tpu_custom_call.1} parent=35 // pred_region
          %vm377 = vcmask 0
          %378 = vst.msk [vmem:[#allocation2] sm:$0x1] %vm377, 0.0
        $region44: #{tpu_custom_call.1} parent=35 // pred_fallthru
          _
        %s379 = smul.u32 %s23, 3
        %s380 = sadd.s32 %s379, %s24
        %s381 = smul.u32 %s380, 64
        %v382 = vlaneseq
        %v383 = vshrl.u32 %v382, 7
        %v384 = vadd.s32 %v383, 8
        %v385 = vadd.s32 %v383, 16
        %v386 = vadd.s32 %v383, 24
        %v387 = vadd.s32 %v383, 32
        %v388 = vadd.s32 %v383, 40
        %v389 = vadd.s32 %v383, 48
        %v390 = vadd.s32 %v383, 56
        %v391 = vstv %s381
        %v392 = vadd.s32 %v391, %v383
        %v393 = vadd.s32 %v391, %v384
        %v394 = vadd.s32 %v391, %v385
        %v395 = vadd.s32 %v391, %v386
        %v396 = vadd.s32 %v391, %v387
        %v397 = vadd.s32 %v391, %v388
        %v398 = vadd.s32 %v391, %v389
        %v399 = vadd.s32 %v391, %v390
        %vm400 = vcmp.lt.s32.totalorder %v392, 300
        %vm401 = vcmp.lt.s32.totalorder %v393, 300
        %vm402 = vcmp.lt.s32.totalorder %v394, 300
        %vm403 = vcmp.lt.s32.totalorder %v395, 300
        %vm404 = vcmp.lt.s32.totalorder %v396, 300
        %vm405 = vcmp.lt.s32.totalorder %v397, 300
        %vm406 = vcmp.lt.s32.totalorder %v398, 300
        %vm407 = vcmp.lt.s32.totalorder %v399, 300
        %v408 = vld [vmem:[%s333] sm:$0xff]
        %v409 = vld [vmem:[%s333 + $0x8] sm:$0xff]
        %v410 = vld [vmem:[%s333 + $0x10] sm:$0xff]
        %v411 = vld [vmem:[%s333 + $0x18] sm:$0xff]
        %v412 = vld [vmem:[%s333 + $0x20] sm:$0xff]
        %v413 = vld [vmem:[%s333 + $0x28] sm:$0xff]
        %v414 = vld [vmem:[%s333 + $0x30] sm:$0xff]
        %v415 = vld [vmem:[%s333 + $0x38] sm:$0xff]
        %v416 = vsel %vm400, 1, 0
        %v417 = vsel %vm401, 1, 0
        %v418 = vsel %vm402, 1, 0
        %v419 = vsel %vm403, 1, 0
        %v420 = vsel %vm404, 1, 0
        %v421 = vsel %vm405, 1, 0
        %v422 = vsel %vm406, 1, 0
        %v423 = vsel %vm407, 1, 0
        %vm424 = vcmp.eq.s32.totalorder %v416, 1
        %vm425 = vcmp.eq.s32.totalorder %v417, 1
        %vm426 = vcmp.eq.s32.totalorder %v418, 1
        %vm427 = vcmp.eq.s32.totalorder %v419, 1
        %vm428 = vcmp.eq.s32.totalorder %v420, 1
        %vm429 = vcmp.eq.s32.totalorder %v421, 1
        %vm430 = vcmp.eq.s32.totalorder %v422, 1
        %vm431 = vcmp.eq.s32.totalorder %v423, 1
        %v432 = vsel %vm424, %v408, 0.0
        %v433 = vsel %vm425, %v409, 0.0
        %v434 = vsel %vm426, %v410, 0.0
        %v435 = vsel %vm427, %v411, 0.0
        %v436 = vsel %vm428, %v412, 0.0
        %v437 = vsel %vm429, %v413, 0.0
        %v438 = vsel %vm430, %v414, 0.0
        %v439 = vsel %vm431, %v415, 0.0
        %v440 = vld [vmem:[%s355] sm:$0xff]
        %v441 = vld [vmem:[%s355 + $0x8] sm:$0xff]
        %v442 = vld [vmem:[%s355 + $0x10] sm:$0xff]
        %v443 = vld [vmem:[%s355 + $0x18] sm:$0xff]
        %v444 = vld [vmem:[%s355 + $0x20] sm:$0xff]
        %v445 = vld [vmem:[%s355 + $0x28] sm:$0xff]
        %v446 = vld [vmem:[%s355 + $0x30] sm:$0xff]
        %v447 = vld [vmem:[%s355 + $0x38] sm:$0xff]
        %vm448 = vcmask 80896
        %v449 = vsel %vm448, %v432, -inf
        %450 = vmax.xlane.f32.xlu0 %v449
        %v451 = vpop.xlane.xlu0 %450
        %v452 = vsel %vm448, %v433, -inf
        %453 = vmax.xlane.f32.xlu0 %v452
        %v454 = vpop.xlane.xlu0 %453
        %v455 = vsel %vm448, %v434, -inf
        %456 = vmax.xlane.f32.xlu0 %v455
        %v457 = vpop.xlane.xlu0 %456
        %v458 = vsel %vm448, %v435, -inf
        %459 = vmax.xlane.f32.xlu0 %v458
        %v460 = vpop.xlane.xlu0 %459
        %v461 = vsel %vm448, %v436, -inf
        %462 = vmax.xlane.f32.xlu0 %v461
        %v463 = vpop.xlane.xlu0 %462
        %v464 = vsel %vm448, %v437, -inf
        %465 = vmax.xlane.f32.xlu0 %v464
        %v466 = vpop.xlane.xlu0 %465
        %v467 = vsel %vm448, %v438, -inf
        %468 = vmax.xlane.f32.xlu0 %v467
        %v469 = vpop.xlane.xlu0 %468
        %v470 = vsel %vm448, %v439, -inf
        %471 = vmax.xlane.f32.xlu0 %v470
        %v472 = vpop.xlane.xlu0 %471
        %v473 = vsub.f32 %v432, %v451
        %v474 = vsub.f32 %v433, %v454
        %v475 = vsub.f32 %v434, %v457
        %v476 = vsub.f32 %v435, %v460
        %v477 = vsub.f32 %v436, %v463
        %v478 = vsub.f32 %v437, %v466
        %v479 = vsub.f32 %v438, %v469
        %v480 = vsub.f32 %v439, %v472
        %v481 = vmul.f32 %v473, 1.442695
        %v482 = vpow.pop %v481
        %v483 = vmul.f32 %v474, 1.442695
        %v484 = vpow.pop %v483
        %v485 = vmul.f32 %v475, 1.442695
        %v486 = vpow.pop %v485
        %v487 = vmul.f32 %v476, 1.442695
        %v488 = vpow.pop %v487
        %v489 = vmul.f32 %v477, 1.442695
        %v490 = vpow.pop %v489
        %v491 = vmul.f32 %v478, 1.442695
        %v492 = vpow.pop %v491
        %v493 = vmul.f32 %v479, 1.442695
        %v494 = vpow.pop %v493
        %v495 = vmul.f32 %v480, 1.442695
        %v496 = vpow.pop %v495
        %v497 = vsel %vm448, %v482, 0.0
        %498 = vadd.xlane.f32.xlu0 %v497
        %v499 = vpop.xlane.xlu0 %498
        %v500 = vsel %vm448, %v484, 0.0
        %501 = vadd.xlane.f32.xlu0 %v500
        %v502 = vpop.xlane.xlu0 %501
        %v503 = vsel %vm448, %v486, 0.0
        %504 = vadd.xlane.f32.xlu0 %v503
        %v505 = vpop.xlane.xlu0 %504
        %v506 = vsel %vm448, %v488, 0.0
        %507 = vadd.xlane.f32.xlu0 %v506
        %v508 = vpop.xlane.xlu0 %507
        %v509 = vsel %vm448, %v490, 0.0
        %510 = vadd.xlane.f32.xlu0 %v509
        %v511 = vpop.xlane.xlu0 %510
        %v512 = vsel %vm448, %v492, 0.0
        %513 = vadd.xlane.f32.xlu0 %v512
        %v514 = vpop.xlane.xlu0 %513
        %v515 = vsel %vm448, %v494, 0.0
        %516 = vadd.xlane.f32.xlu0 %v515
        %v517 = vpop.xlane.xlu0 %516
        %v518 = vsel %vm448, %v496, 0.0
        %519 = vadd.xlane.f32.xlu0 %v518
        %v520 = vpop.xlane.xlu0 %519
        %v521 = vlog2.pop %v499
        %v522 = vmul.f32 %v521, 0.6931472
        %v523 = vlog2.pop %v502
        %v524 = vmul.f32 %v523, 0.6931472
        %v525 = vlog2.pop %v505
        %v526 = vmul.f32 %v525, 0.6931472
        %v527 = vlog2.pop %v508
        %v528 = vmul.f32 %v527, 0.6931472
        %v529 = vlog2.pop %v511
        %v530 = vmul.f32 %v529, 0.6931472
        %v531 = vlog2.pop %v514
        %v532 = vmul.f32 %v531, 0.6931472
        %v533 = vlog2.pop %v517
        %v534 = vmul.f32 %v533, 0.6931472
        %v535 = vlog2.pop %v520
        %v536 = vmul.f32 %v535, 0.6931472
        %v537 = vadd.f32 %v451, %v522
        %v538 = vadd.f32 %v454, %v524
        %v539 = vadd.f32 %v457, %v526
        %v540 = vadd.f32 %v460, %v528
        %v541 = vadd.f32 %v463, %v530
        %v542 = vadd.f32 %v466, %v532
        %v543 = vadd.f32 %v469, %v534
        %v544 = vadd.f32 %v472, %v536
        %v545 = vlaneseq
        %v546 = vand.u32 %v545, 127
        %547 = vset.pattern.permute.xlu0 0
        %548 = vperm.xlu0 %547, %v440
        %v549 = vpop.permute.xlu0 %548
        %550 = vset.pattern.permute.xlu0 0
        %551 = vperm.xlu0 %550, %v441
        %v552 = vpop.permute.xlu0 %551
        %553 = vset.pattern.permute.xlu0 0
        %554 = vperm.xlu0 %553, %v442
        %v555 = vpop.permute.xlu0 %554
        %556 = vset.pattern.permute.xlu0 0
        %557 = vperm.xlu0 %556, %v443
        %v558 = vpop.permute.xlu0 %557
        %559 = vset.pattern.permute.xlu0 0
        %560 = vperm.xlu0 %559, %v444
        %v561 = vpop.permute.xlu0 %560
        %562 = vset.pattern.permute.xlu0 0
        %563 = vperm.xlu0 %562, %v445
        %v564 = vpop.permute.xlu0 %563
        %565 = vset.pattern.permute.xlu0 0
        %566 = vperm.xlu0 %565, %v446
        %v567 = vpop.permute.xlu0 %566
        %568 = vset.pattern.permute.xlu0 0
        %569 = vperm.xlu0 %568, %v447
        %v570 = vpop.permute.xlu0 %569
        %vm571 = vcmp.eq.s32.totalorder %v546, %v549
        %vm572 = vcmp.eq.s32.totalorder %v546, %v552
        %vm573 = vcmp.eq.s32.totalorder %v546, %v555
        %vm574 = vcmp.eq.s32.totalorder %v546, %v558
        %vm575 = vcmp.eq.s32.totalorder %v546, %v561
        %vm576 = vcmp.eq.s32.totalorder %v546, %v564
        %vm577 = vcmp.eq.s32.totalorder %v546, %v567
        %vm578 = vcmp.eq.s32.totalorder %v546, %v570
        %v579 = vsel %vm571, %v432, 0.0
        %v580 = vsel %vm572, %v433, 0.0
        %v581 = vsel %vm573, %v434, 0.0
        %v582 = vsel %vm574, %v435, 0.0
        %v583 = vsel %vm575, %v436, 0.0
        %v584 = vsel %vm576, %v437, 0.0
        %v585 = vsel %vm577, %v438, 0.0
        %v586 = vsel %vm578, %v439, 0.0
        %v587 = vsel %vm448, %v579, 0.0
        %588 = vadd.xlane.f32.xlu0 %v587
        %v589 = vpop.xlane.xlu0 %588
        %v590 = vsel %vm448, %v580, 0.0
        %591 = vadd.xlane.f32.xlu0 %v590
        %v592 = vpop.xlane.xlu0 %591
        %v593 = vsel %vm448, %v581, 0.0
        %594 = vadd.xlane.f32.xlu0 %v593
        %v595 = vpop.xlane.xlu0 %594
        %v596 = vsel %vm448, %v582, 0.0
        %597 = vadd.xlane.f32.xlu0 %v596
        %v598 = vpop.xlane.xlu0 %597
        %v599 = vsel %vm448, %v583, 0.0
        %600 = vadd.xlane.f32.xlu0 %v599
        %v601 = vpop.xlane.xlu0 %600
        %v602 = vsel %vm448, %v584, 0.0
        %603 = vadd.xlane.f32.xlu0 %v602
        %v604 = vpop.xlane.xlu0 %603
        %v605 = vsel %vm448, %v585, 0.0
        %606 = vadd.xlane.f32.xlu0 %v605
        %v607 = vpop.xlane.xlu0 %606
        %v608 = vsel %vm448, %v586, 0.0
        %609 = vadd.xlane.f32.xlu0 %v608
        %v610 = vpop.xlane.xlu0 %609
        %v611 = vsub.f32 %v537, %v589
        %v612 = vsub.f32 %v538, %v592
        %v613 = vsub.f32 %v539, %v595
        %v614 = vsub.f32 %v540, %v598
        %v615 = vsub.f32 %v541, %v601
        %v616 = vsub.f32 %v542, %v604
        %v617 = vsub.f32 %v543, %v607
        %v618 = vsub.f32 %v544, %v610
        %v619 = vsel %vm400, %v611, 0.0
        %v620 = vsel %vm401, %v612, 0.0
        %v621 = vsel %vm402, %v613, 0.0
        %v622 = vsel %vm403, %v614, 0.0
        %v623 = vsel %vm404, %v615, 0.0
        %v624 = vsel %vm405, %v616, 0.0
        %v625 = vsel %vm406, %v617, 0.0
        %v626 = vsel %vm407, %v618, 0.0
        %v627 = vadd.f32 %v619, %v620
        %v628 = vadd.f32 %v627, %v621
        %v629 = vadd.f32 %v628, %v622
        %v630 = vadd.f32 %v629, %v623
        %v631 = vadd.f32 %v630, %v624
        %v632 = vadd.f32 %v631, %v625
        %v633 = vadd.f32 %v632, %v626
        %v634 = vrot.slane %v633, 4
        %v635 = vadd.f32 %v633, %v634
        %v636 = vrot.slane %v635, 2
        %v637 = vadd.f32 %v635, %v636
        %v638 = vrot.slane %v637, 1
        %v639 = vadd.f32 %v637, %v638
        %v640 = vld [vmem:[%s370] sm:$0xff]
        %v641 = vmul.f32 %v640, 1.48695
        %v642 = vadd.f32 %v641, 1.8732
        %v643 = vsub.f32 0.0, %v642
        %v644 = vmul.f32 %v643, 1.442695
        %v645 = vpow.pop %v644
        %v646 = vadd.f32 %v645, 1.0
        %v647 = vrcp.pop %v646
        %v648 = vmul.f32 %v646, %v647
        %v649 = vsub.f32 1.0, %v648
        %v650 = vmul.f32 %v647, %v649
        %v651 = vadd.f32 %v647, %v650
        %vm652 = vweird.f32 %v646
        %vm653 = vweird.f32 %v647
        %vm654 = vmor %vm652, %vm653
        %v655 = vsel %vm654, %v647, %v651
        %v656 = vand.u32 2147483647, %v646
        %vm657 = vcmp.eq.f32.partialorder %v656, 8.507059e+37
        %v658 = vand.u32 %v646, 2147483648
        %v659 = vor.u32 1.1754944e-38, %v658
        %v660 = vsel %vm657, %v659, %v655
        %v661 = vmul.f32 1.0, %v660
        %v662 = vsub.f32 0.0, %v640
        %v663 = vmax.f32 %v662, 0.0
        %v664 = vand.u32 2147483647, %v640
        %v665 = vsub.f32 0.0, %v664
        %v666 = vmul.f32 %v665, 1.442695
        %v667 = vpow.pop %v666
        %v668 = vadd.f32 %v667, 1.0
        %v669 = vlog2.pop %v668
        %v670 = vmul.f32 %v669, 0.6931472
        %v671 = vmul.f32 -0.5, %v667
        %v672 = vadd.f32 %v671, 1.0
        %v673 = vmul.f32 %v672, %v667
        %v674 = vand.u32 2147483647, %v667
        %vm675 = vcmp.lt.f32.partialorder %v674, 0.0004427343
        %v676 = vsel %vm675, %v673, %v670
        %v677 = vadd.f32 %v663, %v676
        %v678 = vmul.f32 %v661, 0.63576
        %v679 = vmul.f32 %v677, 0.5
        %v680 = vsub.f32 %v678, %v679
        %v681 = vsub.f32 %v680, 0.63576
        %682 = vadd.xlane.f32.xlu0 %v681
        %v683 = vpop.xlane.xlu0 %682
        %v684 = vrot.slane %v683, 4
        %v685 = vadd.f32 %v683, %v684
        %v686 = vrot.slane %v685, 2
        %v687 = vadd.f32 %v685, %v686
        %v688 = vrot.slane %v687, 1
        %v689 = vadd.f32 %v687, %v688
        %v690 = vsub.f32 0.0, %v689
        %v691 = vld [vmem:[#allocation2] sm:$0x1]
        %s692 = sld [smem:[#allocation3]]
        %v693 = vstv %s692
        %v694 = vmul.f32 %v639, %v693
        %s695 = sld [smem:[#allocation3 + $0x1]]
        %v696 = vstv %s695
        %v697 = vmul.f32 %v696, %v690
        %v698 = vadd.f32 %v694, %v697
        %v699 = vadd.f32 %v691, %v698
        %vm700 = vcmask 0
        %701 = vst.msk [vmem:[#allocation2] sm:$0x1] %vm700, %v699
        %p702 = scmp.eq.s32.totalorder %s24, 2
        // Predicated region
        $region45: #{tpu_custom_call.1} parent=35 // pred_check
          %p703 = pneg %p702
        $region46: #{tpu_custom_call.1} parent=35 // pred_check_branch
          %705 = sbr.rel (%p703) target = $region48
        $region47: #{tpu_custom_call.1} parent=35 // pred_region
          %vm706 = vcmp.eq.s32.totalorder %v383, 0
          %vm707 = vcmp.eq.s32.totalorder %v546, 0
          %vm708 = vmand %vm706, %vm707
          %v709 = vld [vmem:[#allocation2] sm:$0x1]
          %v711 = vperm.slane %v709, 0
          %712 = vset.pattern.permute.xlu0 0
          %713 = vperm.xlu0 %712, %v711
          %v714 = vpop.permute.xlu0 %713
          %v716 = vsel %vm708, %v714, 0.0
          %717 = vst [vmem:[%s320] sm:$0xff] %v716
        $region48: #{tpu_custom_call.1} parent=35 // pred_fallthru
          _
        %s718 = sand.u32 %s158, 1
        %s719 = scalar_lea.sflag [#allocation4], %s718
        %s720 = sand.u32 %s158, 1
        %s721 = smul.addr %s720, 8
        %s722 = scalar_lea.vmem [#allocation6], %s721
        // Predicated region
        $region49: #{tpu_custom_call.1} parent=35 // pred_check
          %p723 = pneg %p168
        $region50: #{tpu_custom_call.1} parent=35 // pred_check_branch
          %725 = sbr.rel (%p723) target = $region52
        $region51: #{tpu_custom_call.1} parent=35 // pred_region
          %727 = vsyncadd %s719, 0
          %s728 = smul.addr %s23, 8
          %s729 = scalar_lea.hbm %s4, %s728
          %s731 = sshll.u32 %s722, 4
          %s732 = int_to_ptr.vmem [resolvable:$true] %s731
          %s733 = sshll.u32 %s729, 4
          %s734 = int_to_ptr.hbm [resolvable:$true] %s733
          %736 = dma.vmem_to_hbm [thread:$0]  %s732, 128, %s734, %s719
        $region52: #{tpu_custom_call.1} parent=35 // pred_fallthru
          _
      $region36: #{tpu_custom_call.1} parent=5 // pred_fallthru
        _
      %p737 = scmp.le.s32.totalorder 2, %s14
      // Predicated region
      $region53: #{tpu_custom_call.1} parent=5 // pred_check
        %p738 = pneg %p737
      $region54: #{tpu_custom_call.1} parent=5 // pred_check_branch
        %740 = sbr.rel (%p738) target = $region56
      $region55: #{tpu_custom_call.1} parent=5 // pred_region
        %s741 = ssub.s32 %s14, 2
        // Predicated region
        $region57: #{tpu_custom_call.1} parent=55 // pred_check
          %p742 = pneg %p174
        $region58: #{tpu_custom_call.1} parent=55 // pred_check_branch
          %744 = sbr.rel (%p742) target = $region60
        $region59: #{tpu_custom_call.1} parent=55 // pred_region
          %s745 = sand.u32 %s159, 1
          %s746 = scalar_lea.sflag [#allocation4], %s745
          %s747 = sand.u32 %s159, 1
          %s748 = smul.addr %s747, 8
          %s749 = scalar_lea.vmem [#allocation6], %s748
          %751 = dma.done %s746, 128
        $region60: #{tpu_custom_call.1} parent=55 // pred_fallthru
          _
      $region56: #{tpu_custom_call.1} parent=5 // pred_fallthru
        _
    $region6: #{tpu_custom_call.1} parent=1 // loop_footer
      %s18 = sadd.s32 1, %s14
    $region7: #{tpu_custom_call.1} parent=1 // loop_footer_branch
      %13 = sbr.rel target = $region3
    $region8: #{tpu_custom_call.1} parent=1 // loop_exit
      _
    %752 = vsyncpa [#allocation4], 1
    %s753 = scalar_lea.sflag [#allocation4], 1
    %754 = vsyncpa %s753, 1
    %755 = vsyncpa [#allocation5], 1
    %s756 = scalar_lea.sflag [#allocation5], 1
    %757 = vsyncpa %s756, 1

</llo_original>
